<compile_context>
chip_gen: v7x
topology: tpu7x:2x2x1
jax: 0.10.0
libtpu: 0.0.40
codegen_flags: <defaults>
</compile_context>

<pallas_src>
import functools

import jax
import jax.numpy as jnp
from jax import lax
from jax.experimental import pallas as pl
from jax.experimental.pallas import tpu as pltpu


def _round_up(x, m):
    return ((x + m - 1) // m) * m


def _image_encoder_kernel(x_ref, w_ref, b_ref, o_ref, acc_ref, *, n_chunks, chunk):
    # x_ref:   (tb, tk)          input tile, pipelined over (batch, K) grid
    # w_ref:   (tk, d_model_p)   bf16 weight slab (resident when num_k == 1)
    # b_ref:   (1, d_model_p)    f32 bias, VMEM-resident across the grid
    # o_ref:   (tb, d_model_p)   output tile
    # acc_ref: (tb, d_model_p)   f32 accumulator scratch (persists across K)
    k = pl.program_id(1)

    @pl.when(k == 0)
    def _():
        acc_ref[...] = jnp.zeros_like(acc_ref)

    # Partial matmul on the MXU: bf16 operands, f32 accumulation.
    acc_ref[...] += jnp.dot(
        x_ref[...].astype(jnp.bfloat16),
        w_ref[...],
        preferred_element_type=jnp.float32,
    )

    @pl.when(k == pl.num_programs(1) - 1)
    def _():
        tb = acc_ref.shape[0]
        # Pass 1: sum of squares of y = acc + bias, chunked over N so the
        # live set stays in vregs (no VMEM spills competing with DMA/vst).
        sq = jnp.zeros((tb, 1), jnp.float32)
        for c in range(n_chunks):
            lo, hi = c * chunk, (c + 1) * chunk
            y = acc_ref[:, lo:hi] + b_ref[:, lo:hi]
            sq = sq + jnp.sum(y * y, axis=-1, keepdims=True)
        # F.normalize(y, p=2, dim=1, eps=1e-12):
        #   denom = max(||y||, 1e-12)  <=>  inv = rsqrt(max(sum(y^2), 1e-24))
        inv = lax.rsqrt(jnp.maximum(sq, jnp.float32(1e-24)))
        # Pass 2: scale and store, chunked the same way (lane-dense stores).
        for c in range(n_chunks):
            lo, hi = c * chunk, (c + 1) * chunk
            y = acc_ref[:, lo:hi] + b_ref[:, lo:hi]
            o_ref[:, lo:hi] = (y * inv).astype(o_ref.dtype)


def prepare_image_encoder_params(weight, bias, *, lane_multiple=256):
    """One-time parameter preparation (do this at init, NOT per forward).

    weight: (d_model, d_input)  -- nn.Linear layout
    bias:   (d_model,)
    Returns (w_t, b2, d_model) with w_t: (d_input, d_model_p) bf16,
    b2: (1, d_model_p) f32, feature dim zero-padded to a multiple of
    `lane_multiple` (256 = full MXU tile on v6e/v7x).
    """
    d_model, d_input = weight.shape
    d_model_p = max(_round_up(d_model, lane_multiple), lane_multiple)
    w_t = jnp.zeros((d_input, d_model_p), jnp.bfloat16)
    w_t = w_t.at[:, :d_model].set(weight.T.astype(jnp.bfloat16))
    b2 = jnp.zeros((1, d_model_p), jnp.float32)
    b2 = b2.at[:, :d_model].set(bias.astype(jnp.float32))
    return w_t, b2, d_model


def image_encoder_apply(x, w_t, b2, d_model, *, block_b=512, out_dtype=None,
                        return_padded=False):
    """Forward pass: L2-normalized Linear(x), using pre-prepared params.

    x:   (B, d_input)
    w_t: (d_input, d_model_p) bf16  (from prepare_image_encoder_params)
    b2:  (1, d_model_p) f32
    Returns (B, d_model) (or (B, d_model_p) if return_padded=True).
    """
    B, d_input = x.shape
    d_model_p = w_t.shape[1]
    out_dtype = x.dtype if out_dtype is None else out_dtype
    out_itemsize = jnp.dtype(out_dtype).itemsize
    x_itemsize = jnp.dtype(x.dtype).itemsize

    # ---- K tiling: stream the weight in slabs when it is too big to sit in
    # VMEM (critical for v7x's 64 MiB per-TC VMEM).
    w_slab_budget = 8 << 20  # target <= 8 MiB per bf16 weight slab
    if d_input * d_model_p * 2 <= w_slab_budget:
        tk = d_input
    else:
        tk = None
        for cand in (2048, 1024, 512, 256):
            if d_input % cand == 0 and cand * d_model_p * 2 <= w_slab_budget:
                tk = cand
                break
        if tk is None:
            # TODO(synk): pad d_input/x with zero columns to enable K tiling
            # for weights this large with awkward d_input; fall back resident.
            tk = d_input
    num_k = d_input // tk

    # ---- Batch tile: whole batch if small, else block_b, shrunk to fit VMEM.
    tb = B if B <= block_b else block_b

    def vmem_usage(tb_):
        return (2 * tb_ * tk * x_itemsize          # x (double-buffered)
                + 2 * tb_ * d_model_p * out_itemsize  # out (double-buffered)
                + 2 * tk * d_model_p * 2           # bf16 weight slab
                + 2 * d_model_p * 4                # bias
                + tb_ * d_model_p * 4)             # f32 accumulator scratch

    vmem_budget = 48 << 20  # keep well under v7x's 64 MiB per-TC VMEM
    while vmem_usage(tb) > vmem_budget and tb > 128:
        tb = tb // 2
    vmem_limit = min(max(int(vmem_usage(tb) * 1.25), 16 << 20), 64 << 20)

    grid = (pl.cdiv(B, tb), num_k)

    # ---- Epilogue chunking over N (keeps the (tb, d_model_p) f32 live value
    # out of VMEM spills for large d_model_p).
    if d_model_p >= 2048:
        chunk = 512 if d_model_p % 512 == 0 else 256
    else:
        chunk = d_model_p
    n_chunks = d_model_p // chunk

    cost = pl.CostEstimate(
        flops=2 * B * d_input * d_model_p,
        transcendentals=B,  # one rsqrt per row
        bytes_accessed=(x.size * x_itemsize
                        + w_t.size * 2
                        + b2.size * 4
                        + B * d_model_p * out_itemsize),
    )

    kernel = functools.partial(_image_encoder_kernel, n_chunks=n_chunks, chunk=chunk)

    out = pl.pallas_call(
        kernel,
        out_shape=jax.ShapeDtypeStruct((B, d_model_p), out_dtype),
        grid_spec=pltpu.PrefetchScalarGridSpec(
            num_scalar_prefetch=0,
            grid=grid,
            in_specs=[
                # x: one (batch, K) tile per grid step (auto double-buffered).
                pl.BlockSpec((tb, tk), lambda i, k: (i, k)),
                # weight: K slabs; same block every step when num_k == 1
                # (VMEM-resident across the batch axis).
                pl.BlockSpec((tk, d_model_p), lambda i, k: (k, 0)),
                # bias: same block every step -> VMEM-resident.
                pl.BlockSpec((1, d_model_p), lambda i, k: (0, 0)),
            ],
            out_specs=pl.BlockSpec((tb, d_model_p), lambda i, k: (i, 0)),
            scratch_shapes=[pltpu.VMEM((tb, d_model_p), jnp.float32)],
        ),
        compiler_params=pltpu.CompilerParams(
            # Batch tiles independent (megacore on v7x); K is a reduction.
            dimension_semantics=("parallel", "arbitrary"),
            vmem_limit_bytes=vmem_limit,
        ),
        cost_estimate=cost,
    )(x, w_t, b2)

    if return_padded or d_model_p == d_model:
        return out
    # NOTE: this slice is a separate HBM copy; prefer return_padded=True (the
    # extra columns are exactly zero) when the consumer can ignore them.
    return out[:, :d_model]


def image_encoder(x, weight, bias, **kwargs):
    """Convenience one-shot wrapper (prep + apply). Prefer calling
    prepare_image_encoder_params once and image_encoder_apply per step."""
    w_t, b2, d_model = prepare_image_encoder_params(weight, bias)
    return image_encoder_apply(x, w_t, b2, d_model, **kwargs)


if __name__ == "__main__":
    # Small shapes consistent with the module's forward: x is (batch, d_input).
    batch, d_input, d_model = 8, 16, 32

    key = jax.random.PRNGKey(0)
    kx, kw, kb = jax.random.split(key, 3)

    x = jax.random.normal(kx, (batch, d_input), dtype=jnp.float32)
    # nn.Linear weight has shape (d_model, d_input).
    weight = jax.random.normal(kw, (d_model, d_input), dtype=jnp.float32) * 0.1
    bias = jax.random.normal(kb, (d_model,), dtype=jnp.float32) * 0.1

    # Parameter prep done once (init-time), reused for every forward call.
    w_t, b2, dm = prepare_image_encoder_params(weight, bias)
    out = image_encoder_apply(x, w_t, b2, dm)
    out = jax.block_until_ready(out)

    # Reference in plain JAX (same math as PyTorch F.normalize(Linear(x))).
    y_ref = x @ weight.T + bias
    ref = y_ref / jnp.maximum(
        jnp.sqrt(jnp.sum(y_ref * y_ref, axis=-1, keepdims=True)), 1e-12
    )

    assert out.shape == (batch, d_model)
    # bf16 MXU operands with f32 accumulation -> allow ~1e-2 level tolerance.
    assert jnp.allclose(out, ref, atol=3e-2, rtol=3e-2), (
        float(jnp.max(jnp.abs(out - ref)))
    )

    print("KERNEL_OK")
</pallas_src>

<mosaic_0001>
module attributes {stable_mosaic.version = 11 : i64} {
  func.func @_image_encoder_kernel(%arg0: i32, %arg1: i32, %arg2: memref<8x16xf32, #tpu.memory_space<vmem>>, %arg3: memref<16x256xbf16, #tpu.memory_space<vmem>>, %arg4: memref<1x256xf32, #tpu.memory_space<vmem>>, %arg5: memref<8x256xf32, #tpu.memory_space<vmem>>, %arg6: memref<8x256xf32, #tpu.memory_space<vmem>>) attributes {dimension_semantics = [#tpu.dimension_semantics<parallel>, #tpu.dimension_semantics<arbitrary>], iteration_bounds = array<i64: 1, 1>, scalar_prefetch = 0 : i64, scratch_operands = 1 : i64, tpu.core_type = #tpu.core_type<tc>, window_params = [{transform_indices = @transform_0, window_bounds = array<i64: 8, 16>}, {transform_indices = @transform_1, window_bounds = array<i64: 16, 256>}, {pipeline_mode = #tpu.pipeline_mode<synchronous>, transform_indices = @transform_2, window_bounds = array<i64: 1, 256>}, {transform_indices = @transform_3, window_bounds = array<i64: 8, 256>}]} {
    %c0_i32 = arith.constant 0 : i32
    %0 = arith.cmpi eq, %arg1, %c0_i32 : i32
    %1 = arith.extui %0 : i1 to i32
    %c0_i32_0 = arith.constant 0 : i32
    %2 = arith.cmpi ne, %1, %c0_i32_0 : i32
    scf.if %2 {
      %cst_10 = arith.constant 0.000000e+00 : f32
      %13 = vector.broadcast %cst_10 : f32 to vector<8x256xf32>
      %c0_11 = arith.constant 0 : index
      %c0_12 = arith.constant 0 : index
      %14 = vector.load %arg6[%c0_11, %c0_12] : memref<8x256xf32, #tpu.memory_space<vmem>>, vector<8x256xf32>
      tpu.vector_store %arg6[%c0_11, %c0_12], %13 {strides = array<i32>} : memref<8x256xf32, #tpu.memory_space<vmem>>, vector<8x256xf32>,
    } else {
    }
    %c0 = arith.constant 0 : index
    %c0_1 = arith.constant 0 : index
    %3 = vector.load %arg6[%c0, %c0_1] : memref<8x256xf32, #tpu.memory_space<vmem>>, vector<8x256xf32>
    %c0_2 = arith.constant 0 : index
    %c0_3 = arith.constant 0 : index
    %4 = vector.load %arg2[%c0_2, %c0_3] : memref<8x16xf32, #tpu.memory_space<vmem>>, vector<8x16xf32>
    %5 = arith.truncf %4 : vector<8x16xf32> to vector<8x16xbf16>
    %c0_4 = arith.constant 0 : index
    %c0_5 = arith.constant 0 : index
    %6 = vector.load %arg3[%c0_4, %c0_5] : memref<16x256xbf16, #tpu.memory_space<vmem>>, vector<16x256xbf16>
    %cst = arith.constant dense<0.000000e+00> : vector<8x256xf32>
    %7 = tpu.matmul %5, %6, %cst {dimension_numbers = #tpu.dot_dimension_numbers<[1], [0], [0], [1], [0, 0, 1, 1], [], []>} : vector<8x16xbf16>, vector<16x256xbf16>, vector<8x256xf32> -> vector<8x256xf32>
    %8 = arith.addf %3, %7 : vector<8x256xf32>
    %c0_6 = arith.constant 0 : index
    %c0_7 = arith.constant 0 : index
    %9 = vector.load %arg6[%c0_6, %c0_7] : memref<8x256xf32, #tpu.memory_space<vmem>>, vector<8x256xf32>
    tpu.vector_store %arg6[%c0_6, %c0_7], %8 {strides = array<i32>} : memref<8x256xf32, #tpu.memory_space<vmem>>, vector<8x256xf32>,
    %c0_i32_8 = arith.constant 0 : i32
    %10 = arith.cmpi eq, %arg1, %c0_i32_8 : i32
    %11 = arith.extui %10 : i1 to i32
    %c0_i32_9 = arith.constant 0 : i32
    %12 = arith.cmpi ne, %11, %c0_i32_9 : i32
    scf.if %12 {
      %cst_10 = arith.constant 0.000000e+00 : f32
      %13 = vector.broadcast %cst_10 : f32 to vector<8x1xf32>
      %c0_11 = arith.constant 0 : index
      %c0_12 = arith.constant 0 : index
      %14 = vector.load %arg6[%c0_11, %c0_12] : memref<8x256xf32, #tpu.memory_space<vmem>>, vector<8x256xf32>
      %c0_13 = arith.constant 0 : index
      %c0_14 = arith.constant 0 : index
      %15 = vector.load %arg4[%c0_13, %c0_14] : memref<1x256xf32, #tpu.memory_space<vmem>>, vector<1x256xf32>
      %16 = vector.broadcast %15 : vector<1x256xf32> to vector<8x256xf32>
      %17 = arith.addf %14, %16 : vector<8x256xf32>
      %18 = arith.mulf %17, %17 : vector<8x256xf32>
      %cst_15 = arith.constant dense<0.000000e+00> : vector<8xf32>
      %19 = vector.multi_reduction <add>, %18, %cst_15 [1] : vector<8x256xf32> to vector<8xf32>
      %20 = vector.shape_cast %19 : vector<8xf32> to vector<8x1xf32>
      %21 = arith.addf %13, %20 : vector<8x1xf32>
      %cst_16 = arith.constant 1.000000e-24 : f32
      %22 = vector.broadcast %cst_16 : f32 to vector<8x1xf32>
      %23 = arith.maximumf %21, %22 : vector<8x1xf32>
      %24 = math.rsqrt %23 : vector<8x1xf32>
      %c0_17 = arith.constant 0 : index
      %c0_18 = arith.constant 0 : index
      %25 = vector.load %arg6[%c0_17, %c0_18] : memref<8x256xf32, #tpu.memory_space<vmem>>, vector<8x256xf32>
      %c0_19 = arith.constant 0 : index
      %c0_20 = arith.constant 0 : index
      %26 = vector.load %arg4[%c0_19, %c0_20] : memref<1x256xf32, #tpu.memory_space<vmem>>, vector<1x256xf32>
      %27 = vector.broadcast %26 : vector<1x256xf32> to vector<8x256xf32>
      %28 = arith.addf %25, %27 : vector<8x256xf32>
      %29 = vector.broadcast %24 : vector<8x1xf32> to vector<8x256xf32>
      %30 = arith.mulf %28, %29 : vector<8x256xf32>
      %c0_21 = arith.constant 0 : index
      %c0_22 = arith.constant 0 : index
      %31 = vector.load %arg5[%c0_21, %c0_22] : memref<8x256xf32, #tpu.memory_space<vmem>>, vector<8x256xf32>
      tpu.vector_store %arg5[%c0_21, %c0_22], %30 {strides = array<i32>} : memref<8x256xf32, #tpu.memory_space<vmem>>, vector<8x256xf32>,
    } else {
    }
    return
  }
  func.func @transform_0(%arg0: i32, %arg1: i32) -> (i32, i32) {
    %c0_i32 = arith.constant 0 : i32
    return %arg0, %arg1 : i32, i32
  }
  func.func @transform_1(%arg0: i32, %arg1: i32) -> (i32, i32) {
    %c0_i32 = arith.constant 0 : i32
    %c0_i32_0 = arith.constant 0 : i32
    return %arg1, %c0_i32 : i32, i32
  }
  func.func @transform_2(%arg0: i32, %arg1: i32) -> (i32, i32) {
    %c0_i32 = arith.constant 0 : i32
    %c0_i32_0 = arith.constant 0 : i32
    %c0_i32_1 = arith.constant 0 : i32
    return %c0_i32, %c0_i32_0 : i32, i32
  }
  func.func @transform_3(%arg0: i32, %arg1: i32) -> (i32, i32) {
    %c0_i32 = arith.constant 0 : i32
    %c0_i32_0 = arith.constant 0 : i32
    return %arg0, %c0_i32 : i32, i32
  }
}

</mosaic_0001>

<llo_original>
// kernel: tpu_custom_call.1
$region0: #{tpu_custom_call.1}
  #allocation0 [shape = 'u32[]', space=smem, size = 0x4, offset = 0x4, fixed_abs, tag = 'smem constant byte address 0x4 - core index']
  #allocation1 [shape = 'u32[144,128]{1,0:T(1,128)}', space=vmem, size = 0x12000, scoped, tag = 'internal scratch']
  #allocation2 [shape = 'f32[8,256]{1,0:T(8,128)}', space=vmem, size = 0x2000, scoped, tag = 'scratch operand']
  %s0 = inlined_call_operand.hbm [shape: f32[8,16], index: 0, kind: input, shape index: {}]
  %s1 = inlined_call_operand.hbm [shape: bf16[16,256], index: 1, kind: input, shape index: {}]
  %s2 = inlined_call_operand.vmem [shape: f32[1,256], index: 2, kind: input, shape index: {}]
  %s3 = inlined_call_operand.hbm [shape: f32[8,256], index: 3, kind: output, shape index: {}]
  %s4 = sld [smem:[#allocation0]]
  $region38: #{tpu_custom_call.1} parent=0
    _
  %s6 = ssub.s32 1, %s4
  %s7 = scalar_select 0, %s6, %s4
  $region1: #{tpu_custom_call.1} parent=0
    #allocation3 [shape = 'u8[4096]{0}', space=vmem, size = 0x1000, scoped, tag = 'input window, operand 0, single buffered']
    #allocation4 [shape = 's32[1]{0}', space=sflag, size = 0x4, scoped, tag = 'scoped memory for tpu_custom_call.1']
    #allocation5 [shape = 's32[1]{0}', space=sflag, size = 0x4, scoped, tag = 'scoped memory for tpu_custom_call.1']
    #allocation6 [shape = 'u8[8192]{0}', space=vmem, size = 0x2000, scoped, tag = 'input window, operand 1, single buffered']
    #allocation7 [shape = 's32[1]{0}', space=sflag, size = 0x4, scoped, tag = 'scoped memory for tpu_custom_call.1']
    #allocation8 [shape = 'u8[8192]{0}', space=vmem, size = 0x2000, scoped, tag = 'output window, operand 0, single buffered']
    %8 = vsyncpa [#allocation4], 0
    %9 = vsyncpa [#allocation7], 0
    %10 = vsyncpa [#allocation5], 0
    // Predicated region
    $region2: #{tpu_custom_call.1} parent=1 // pred_check
      _
    $region3: #{tpu_custom_call.1} parent=1 // pred_check_branch
      %12 = sbr.rel (0) target = $region5
    $region4: #{tpu_custom_call.1} parent=1 // pred_region
      %s14 = ssub.s32 128, 128
      %15 = vsyncadd [#allocation4], %s14
      %s17 = sshll.u32 [#allocation3], 4
      %s18 = int_to_ptr.vmem [resolvable:$true] %s17
      %20 = dma.hbm_to_vmem [thread:$0]  %s0, 128, %s18, [#allocation4]
    $region5: #{tpu_custom_call.1} parent=1 // pred_fallthru
      _
    // Predicated region
    $region6: #{tpu_custom_call.1} parent=1 // pred_check
      _
    $region7: #{tpu_custom_call.1} parent=1 // pred_check_branch
      %22 = sbr.rel (0) target = $region9
    $region8: #{tpu_custom_call.1} parent=1 // pred_region
      %s24 = ssub.s32 256, 256
      %25 = vsyncadd [#allocation7], %s24
      %s26 = sshll.u32 [#allocation6], 4
      %s27 = int_to_ptr.vmem [resolvable:$true] %s26
      %32 = dma.hbm_to_vmem [thread:$0]  %s1, 256, %s27, [#allocation7], 128, 128, 8
    $region9: #{tpu_custom_call.1} parent=1 // pred_fallthru
      _
    // Predicated region
    $region10: #{tpu_custom_call.1} parent=1 // pred_check
      _
    $region11: #{tpu_custom_call.1} parent=1 // pred_check_branch
      %34 = sbr.rel (0) target = $region13
    $region12: #{tpu_custom_call.1} parent=1 // pred_region
      _
    $region13: #{tpu_custom_call.1} parent=1 // pred_fallthru
      _
    // Predicated region
    $region14: #{tpu_custom_call.1} parent=1 // pred_check
      _
    $region15: #{tpu_custom_call.1} parent=1 // pred_check_branch
      %36 = sbr.rel (0) target = $region17
    $region16: #{tpu_custom_call.1} parent=1 // pred_region
      %37 = dma.done [#allocation4], 128
    $region17: #{tpu_custom_call.1} parent=1 // pred_fallthru
      _
    // Predicated region
    $region18: #{tpu_custom_call.1} parent=1 // pred_check
      _
    $region19: #{tpu_custom_call.1} parent=1 // pred_check_branch
      %39 = sbr.rel (0) target = $region21
    $region20: #{tpu_custom_call.1} parent=1 // pred_region
      %40 = dma.done [#allocation7], 256
    $region21: #{tpu_custom_call.1} parent=1 // pred_fallthru
      _
    %p42 = scmp.eq.s32.totalorder 0, 0
    // Predicated region
    $region22: #{tpu_custom_call.1} parent=1 // pred_check
      %p43 = pneg %p42
    $region23: #{tpu_custom_call.1} parent=1 // pred_check_branch
      %45 = sbr.rel (%p43) target = $region25
    $region24: #{tpu_custom_call.1} parent=1 // pred_region
      %46 = vst [vmem:[#allocation2] sm:$0xff] 0.0
      %47 = vst [vmem:[#allocation2 + $0x8] sm:$0xff] 0.0
    $region25: #{tpu_custom_call.1} parent=1 // pred_fallthru
      _
    %v48 = vld [vmem:[#allocation2] sm:$0xff]
    %v49 = vld [vmem:[#allocation2 + $0x8] sm:$0xff]
    %v50 = vld [vmem:[#allocation3] sm:$0xff]
    %v51 = vpack.c.bf16 %v50, %v50
    %v52 = vld [vmem:[#allocation6] sm:$0xff]
    %v53 = vld [vmem:[#allocation6 + $0x8] sm:$0xff]
    %v56 = vunpack.c.l.b16 %v52
    %v57 = vunpack.c.h.b16 %v52
    %v58 = vunpack.c.l.b16 %v53
    %v59 = vunpack.c.h.b16 %v53
    %v60 = vpack.c.b16 %v58, %v56
    %v61 = vpack.c.b16 %v59, %v57
    %vm64 = vcmask 130048
    %v66 = vsel %vm64, %v51, 0
    %68 = vmatprep.subr.bf16.mxu0 %v61
    %69 = vmatpush1.bf16.msra.mxu0 %v60
    %70 = vmatprep.subr.bf16.mxu0 0
    %71 = vmatpush1.bf16.msra.mxu0 0
    %72 = vmatprep.subr.bf16.mxu0 0
    %73 = vmatpush1.bf16.msra.mxu0 0
    %74 = vmatprep.subr.bf16.mxu0 0
    %75 = vmatpush1.bf16.msra.mxu0 0
    %76 = vmatprep.subr.bf16.mxu0 0
    %77 = vmatpush1.bf16.msra.mxu0 0
    %78 = vmatprep.subr.bf16.mxu0 0
    %79 = vmatpush1.bf16.msra.mxu0 0
    %80 = vmatprep.subr.bf16.mxu0 0
    %81 = vmatpush1.bf16.msra.mxu0 0
    %82 = vmatprep.subr.bf16.mxu0 0
    %83 = vmatpush1.bf16.msra.mxu0 0
    %84 = vmatprep.subr.bf16.mxu0 0
    %85 = vmatpush1.bf16.msra.mxu0 0
    %86 = vmatprep.subr.bf16.mxu0 0
    %87 = vmatpush1.bf16.msra.mxu0 0
    %88 = vmatprep.subr.bf16.mxu0 0
    %89 = vmatpush1.bf16.msra.mxu0 0
    %90 = vmatprep.subr.bf16.mxu0 0
    %91 = vmatpush1.bf16.msra.mxu0 0
    %92 = vmatprep.subr.bf16.mxu0 0
    %93 = vmatpush1.bf16.msra.mxu0 0
    %94 = vmatprep.subr.bf16.mxu0 0
    %95 = vmatpush1.bf16.msra.mxu0 0
    %96 = vmatprep.subr.bf16.mxu0 0
    %97 = vmatpush1.bf16.msra.mxu0 0
    %98 = vmatprep.subr.bf16.mxu0 0
    %99 = vmatpush1.bf16.msra.mxu0 0
    %100 = vmatprep.mubr.bf16.mxu0 0
    %101 = vmatmul.mubr.bf16.gmra.mrb[0].mxu0 %v66
    %v102 = vpop.f32.mrb[0].mxu0
    %v103 = vadd.f32 0.0, %v102
    %v104 = vpop.f32.mrb[0].mxu0
    %v105 = vadd.f32 0.0, %v104
    %v106 = vpop.f32.mrb[0].mxu0
    %v107 = vpop.f32.mrb[0].mxu0
    %108 = vdwg.mxu0
    %v109 = vadd.f32 %v48, %v103
    %v110 = vadd.f32 %v49, %v105
    %111 = vst [vmem:[#allocation2] sm:$0xff] %v109
    %112 = vst [vmem:[#allocation2 + $0x8] sm:$0xff] %v110
    // Predicated region
    $region26: #{tpu_custom_call.1} parent=1 // pred_check
      %p113 = pneg %p42
    $region27: #{tpu_custom_call.1} parent=1 // pred_check_branch
      %115 = sbr.rel (%p113) target = $region29
    $region28: #{tpu_custom_call.1} parent=1 // pred_region
      %v116 = vld [vmem:[#allocation2] sm:$0xff]
      %v117 = vld [vmem:[#allocation2 + $0x8] sm:$0xff]
      %v118 = vld [vmem:[%s2] sm:$0x3]
      %v120 = vlaneseq
      %v121 = vshrl.u32 %v120, 7
      %v122 = vsub.s32 0, %v121
      %v123 = vrot.slane %v118, %v122
      %v124 = vlaneseq
      %v125 = vshrl.u32 %v124, 7
      %v126 = vsub.s32 1, %v125
      %v127 = vrot.slane %v118, %v126
      %v130 = vadd.f32 %v116, %v123
      %v131 = vadd.f32 %v117, %v127
      %v132 = vmul.f32 %v130, %v130
      %v133 = vmul.f32 %v131, %v131
      %v134 = vadd.f32 %v132, %v133
      %135 = vadd.xlane.f32.xlu0 %v134
      %v136 = vpop.xlane.xlu0 %135
      %v137 = vadd.f32 %v136, 0.0
      %v138 = vmax.f32 %v137, 1e-24
      %v139 = vrsqrt.pop %v138
      %v140 = vmul.f32 %v130, %v139
      %v141 = vmul.f32 %v131, %v139
      %142 = vst [vmem:[#allocation8] sm:$0xff] %v140
      %143 = vst [vmem:[#allocation8 + $0x8] sm:$0xff] %v141
    $region29: #{tpu_custom_call.1} parent=1 // pred_fallthru
      _
    // Predicated region
    $region30: #{tpu_custom_call.1} parent=1 // pred_check
      _
    $region31: #{tpu_custom_call.1} parent=1 // pred_check_branch
      %145 = sbr.rel (0) target = $region33
    $region32: #{tpu_custom_call.1} parent=1 // pred_region
      %s147 = ssub.s32 256, 256
      %148 = vsyncadd [#allocation5], %s147
      %s150 = sshll.u32 [#allocation8], 4
      %s151 = int_to_ptr.vmem [resolvable:$true] %s150
      %153 = dma.vmem_to_hbm [thread:$0]  %s151, 256, %s3, [#allocation5]
    $region33: #{tpu_custom_call.1} parent=1 // pred_fallthru
      _
    // Predicated region
    $region34: #{tpu_custom_call.1} parent=1 // pred_check
      _
    $region35: #{tpu_custom_call.1} parent=1 // pred_check_branch
      %155 = sbr.rel (0) target = $region37
    $region36: #{tpu_custom_call.1} parent=1 // pred_region
      %156 = dma.done [#allocation5], 256
    $region37: #{tpu_custom_call.1} parent=1 // pred_fallthru
      _
    %157 = vsyncpa [#allocation4], 1
    %158 = vsyncpa [#allocation7], 1
    %159 = vsyncpa [#allocation5], 1

</llo_original>
